<compile_context>
chip_gen: v7x
topology: tpu7x:2x2x1
jax: 0.10.0
libtpu: 0.0.40
codegen_flags: <defaults>
</compile_context>

<pallas_src>
import functools

import jax
import jax.numpy as jnp
from jax import lax
from jax.experimental import pallas as pl
from jax.experimental.pallas import tpu as pltpu


def _elu(v):
    # ELU(alpha=1.0).  NOTE: jnp.expm1 would save one VPU subtract, but exp(v)-1
    # is kept for broad Mosaic lowering support; difference is below tolerance.
    return jnp.where(v > 0, v, jnp.exp(v) - 1.0)


def _downsample_kernel(xp_ref, w1_ref, b1_ref, w2_ref, b2_ref, o_ref,
                       pad1_ref, pad2_ref, *, nb, hp, wp, cin, cout):
    # --- one-time zero of the padded scratch buffers (scratch persists across
    # grid steps; only the interior is rewritten below, so the halo stays zero).
    @pl.when(pl.program_id(0) == 0)
    def _():
        pad1_ref[...] = jnp.zeros(pad1_ref.shape, pad1_ref.dtype)
        pad2_ref[...] = jnp.zeros(pad2_ref.shape, pad2_ref.dtype)

    # --- MaxPool2d(kernel_size=2, stride=2): max over the 4 pre-split slots.
    pooled = jnp.maximum(jnp.maximum(xp_ref[0], xp_ref[1]),
                         jnp.maximum(xp_ref[2], xp_ref[3]))   # (nb, hp, wp*cin)
    # write into the interior of the zero-padded buffer (lane layout = [col, chan])
    pad1_ref[:, 1:hp + 1, cin:(wp + 1) * cin] = pooled

    m = nb * hp
    lanes = wp * cout

    def conv_bn_elu(pad_ref, w_ref, b_ref, c):
        # Banded-weight 3x3 SAME conv: for each kernel row kh, one MXU matmul
        #   (nb*hp, (wp+2)*c) @ ((wp+2)*c, wp*cout)
        # The row slice keeps the lane dim intact, so the reshape only merges
        # leading dims (no relayout, no per-tap strided copies).
        acc = jnp.zeros((m, lanes), jnp.float32)
        for kh in range(3):
            rows = pad_ref[:, kh:kh + hp, :].reshape(m, (wp + 2) * c)
            acc = acc + jnp.dot(rows, w_ref[kh],
                                preferred_element_type=jnp.float32)
        # BatchNorm(eval): scale already folded into the weights; add shift.
        return _elu(acc + b_ref[...])

    # --- Conv1(3x3, pad=1, bias=False) + BN(eval) + ELU
    y = conv_bn_elu(pad1_ref, w1_ref, b1_ref, cin)            # (nb*hp, wp*cout)
    # TODO(synk): nn.Dropout(p=0.2) between the two conv blocks is identity in
    # eval mode; train-mode RNG masking is intentionally not implemented.

    # --- Conv2(3x3, pad=1, bias=False) + BN(eval) + ELU
    pad2_ref[:, 1:hp + 1, cout:(wp + 1) * cout] = y.reshape(nb, hp, lanes)
    z = conv_bn_elu(pad2_ref, w2_ref, b2_ref, cout)           # (nb*hp, wp*cout)

    # lane-dense output slab (last dim = wp*cout)
    o_ref[...] = z.reshape(nb, hp, lanes).astype(o_ref.dtype)


def _fold_bn(gamma, beta, mean, var, eps=1e-5):
    scale = gamma / jnp.sqrt(var + eps)
    shift = beta - mean * scale
    return scale, shift


def _band_weights(w_hwio, wp):
    """(3,3,ci,co) HWIO conv weights -> (3, (wp+2)*ci, wp*co) banded matrices.

    B[kh, (w+kw)*ci + i, w*co + o] = w_hwio[kh, kw, i, o] (zeros elsewhere), so a
    zero-padded feature row with lane layout [col, chan] times B[kh] yields the
    kh-row contribution of a 3x3 SAME conv for every output column at once.
    """
    assert w_hwio.shape[:2] == (3, 3)
    ci, co = w_hwio.shape[2], w_hwio.shape[3]
    q = jnp.arange(wp + 2)[:, None]                    # padded input column
    wcol = jnp.arange(wp)[None, :]                     # output column
    onehot = (q - wcol == jnp.arange(3)[:, None, None]).astype(w_hwio.dtype)  # (3,wp+2,wp)
    b = jnp.einsum('kqw,hkio->hqiwo', onehot, w_hwio)  # (3, wp+2, ci, wp, co)
    return b.reshape(3, (wp + 2) * ci, wp * co)


def downsampling_layer(x_nchw, params, *, batch_block=None):
    """x_nchw: (N, Cin, H, W) float32 -> (N, Cout, H//2, W//2) float32 (eval mode)."""
    w1, g1, be1, m1, v1, w2, g2, be2, m2, v2 = params
    n, cin, h, w = x_nchw.shape
    assert h % 2 == 0 and w % 2 == 0, "MaxPool2d(2) pre-split assumes even H, W"
    hp, wp = h // 2, w // 2
    cout = w1.shape[-1]

    # Fuse the whole batch into one grid step by default (per-step overhead
    # dominates at these sizes).  On v7x one may set batch_block = n // 2 to give
    # both TensorCores work (then switch the scratch-halo zeroing to per-step).
    nb = n if batch_block is None else batch_block
    assert n % nb == 0

    s1, sh1 = _fold_bn(g1, be1, m1, v1)
    s2, sh2 = _fold_bn(g2, be2, m2, v2)

    # Fold BN scale into the conv weights; build banded matrices in the wrapper.
    w1b = _band_weights(w1 * s1, wp)                   # (3, (wp+2)*cin,  wp*cout)
    w2b = _band_weights(w2 * s2, wp)                   # (3, (wp+2)*cout, wp*cout)
    b1r = jnp.tile(sh1, wp)[None, :]                   # (1, wp*cout)
    b2r = jnp.tile(sh2, wp)[None, :]

    # NCHW -> NHWC, pre-split each 2x2 pooling window into a leading slot axis,
    # keep a lane-dense trailing dim (wp*cin).
    x_nhwc = jnp.transpose(x_nchw, (0, 2, 3, 1))
    xp = (x_nhwc.reshape(n, hp, 2, wp, 2, cin)
          .transpose(2, 4, 0, 1, 3, 5)
          .reshape(4, n, hp, wp * cin))

    kernel = functools.partial(_downsample_kernel, nb=nb, hp=hp, wp=wp,
                               cin=cin, cout=cout)

    flops = 2 * n * hp * wp * 9 * (cin * cout + cout * cout)
    bytes_accessed = 4 * (xp.size + w1b.size + w2b.size + b1r.size + b2r.size
                          + n * hp * wp * cout)
    cost = pl.CostEstimate(flops=flops,
                           transcendentals=2 * n * hp * wp * cout,
                           bytes_accessed=bytes_accessed)

    out_flat = pl.pallas_call(
        kernel,
        out_shape=jax.ShapeDtypeStruct((n, hp, wp * cout), x_nchw.dtype),
        grid=(n // nb,),
        in_specs=[
            pl.BlockSpec((4, nb, hp, wp * cin), lambda i: (0, i, 0, 0)),
            pl.BlockSpec((3, (wp + 2) * cin, wp * cout), lambda i: (0, 0, 0)),
            pl.BlockSpec((1, wp * cout), lambda i: (0, 0)),
            pl.BlockSpec((3, (wp + 2) * cout, wp * cout), lambda i: (0, 0, 0)),
            pl.BlockSpec((1, wp * cout), lambda i: (0, 0)),
        ],
        out_specs=pl.BlockSpec((nb, hp, wp * cout), lambda i: (i, 0, 0)),
        scratch_shapes=[
            pltpu.VMEM((nb, hp + 2, (wp + 2) * cin), jnp.float32),
            pltpu.VMEM((nb, hp + 2, (wp + 2) * cout), jnp.float32),
        ],
        compiler_params=pltpu.CompilerParams(
            # "arbitrary": the one-time scratch-halo zeroing relies on scratch
            # persisting sequentially across grid steps (measured perf delta vs
            # "parallel" is ~0 anyway).
            dimension_semantics=("arbitrary",)),
        cost_estimate=cost,
    )(xp, w1b, b1r, w2b, b2r)

    out = out_flat.reshape(n, hp, wp, cout)
    return jnp.transpose(out, (0, 3, 1, 2))              # back to NCHW


def reference(x_nchw, params):
    """Pure-JAX reference (NHWC internally), eval-mode semantics."""
    w1, g1, be1, m1, v1, w2, g2, be2, m2, v2 = params
    eps = 1e-5

    def bn(v, g, b, m, var):
        return (v - m) / jnp.sqrt(var + eps) * g + b

    def elu(v):
        return jnp.where(v > 0, v, jnp.exp(v) - 1.0)

    x = jnp.transpose(x_nchw, (0, 2, 3, 1))
    pooled = lax.reduce_window(x, -jnp.inf, lax.max,
                               (1, 2, 2, 1), (1, 2, 2, 1), "VALID")
    y = lax.conv_general_dilated(pooled, w1, (1, 1), "SAME",
                                 dimension_numbers=("NHWC", "HWIO", "NHWC"),
                                 precision=lax.Precision.HIGHEST)
    y = elu(bn(y, g1, be1, m1, v1))
    z = lax.conv_general_dilated(y, w2, (1, 1), "SAME",
                                 dimension_numbers=("NHWC", "HWIO", "NHWC"),
                                 precision=lax.Precision.HIGHEST)
    z = elu(bn(z, g2, be2, m2, v2))
    return jnp.transpose(z, (0, 3, 1, 2))


def make_params(key, cin, cout):
    ks = jax.random.split(key, 10)
    w1 = 0.1 * jax.random.normal(ks[0], (3, 3, cin, cout), jnp.float32)   # HWIO
    g1 = jax.random.uniform(ks[1], (cout,), jnp.float32, 0.5, 1.5)
    be1 = 0.1 * jax.random.normal(ks[2], (cout,), jnp.float32)
    m1 = 0.1 * jax.random.normal(ks[3], (cout,), jnp.float32)
    v1 = jax.random.uniform(ks[4], (cout,), jnp.float32, 0.5, 1.5)
    w2 = 0.1 * jax.random.normal(ks[5], (3, 3, cout, cout), jnp.float32)
    g2 = jax.random.uniform(ks[6], (cout,), jnp.float32, 0.5, 1.5)
    be2 = 0.1 * jax.random.normal(ks[7], (cout,), jnp.float32)
    m2 = 0.1 * jax.random.normal(ks[8], (cout,), jnp.float32)
    v2 = jax.random.uniform(ks[9], (cout,), jnp.float32, 0.5, 1.5)
    return (w1, g1, be1, m1, v1, w2, g2, be2, m2, v2)


if __name__ == "__main__":
    key = jax.random.PRNGKey(0)
    k_x, k_p = jax.random.split(key)

    N, CIN, COUT, H, W = 2, 4, 8, 16, 16
    x = jax.random.normal(k_x, (N, CIN, H, W), jnp.float32)
    params = make_params(k_p, CIN, COUT)

    out = jax.block_until_ready(downsampling_layer(x, params))
    ref = jax.block_until_ready(reference(x, params))

    assert out.shape == (N, COUT, H // 2, W // 2), out.shape
    assert jnp.allclose(out, ref, atol=1e-2, rtol=1e-2), \
        float(jnp.max(jnp.abs(out - ref)))

    print("KERNEL_OK")
</pallas_src>

<mosaic_0001>
module attributes {stable_mosaic.version = 11 : i64} {
  func.func @_downsample_kernel(%arg0: i32, %arg1: memref<4x2x8x32xf32, #tpu.memory_space<vmem>>, %arg2: memref<3x40x64xf32, #tpu.memory_space<vmem>>, %arg3: memref<1x64xf32, #tpu.memory_space<vmem>>, %arg4: memref<3x80x64xf32, #tpu.memory_space<vmem>>, %arg5: memref<1x64xf32, #tpu.memory_space<vmem>>, %arg6: memref<2x8x64xf32, #tpu.memory_space<vmem>>, %arg7: memref<2x10x40xf32, #tpu.memory_space<vmem>>, %arg8: memref<2x10x80xf32, #tpu.memory_space<vmem>>) attributes {dimension_semantics = [#tpu.dimension_semantics<arbitrary>], iteration_bounds = array<i64: 1>, scalar_prefetch = 0 : i64, scratch_operands = 2 : i64, tpu.core_type = #tpu.core_type<tc>, window_params = [{transform_indices = @transform_0, window_bounds = array<i64: 4, 2, 8, 32>}, {pipeline_mode = #tpu.pipeline_mode<synchronous>, transform_indices = @transform_1, window_bounds = array<i64: 3, 40, 64>}, {pipeline_mode = #tpu.pipeline_mode<synchronous>, transform_indices = @transform_2, window_bounds = array<i64: 1, 64>}, {pipeline_mode = #tpu.pipeline_mode<synchronous>, transform_indices = @transform_3, window_bounds = array<i64: 3, 80, 64>}, {pipeline_mode = #tpu.pipeline_mode<synchronous>, transform_indices = @transform_4, window_bounds = array<i64: 1, 64>}, {transform_indices = @transform_5, window_bounds = array<i64: 2, 8, 64>}]} {
    %c0_i32 = arith.constant 0 : i32
    %0 = arith.cmpi eq, %arg0, %c0_i32 : i32
    %1 = arith.extui %0 : i1 to i32
    %c0_i32_0 = arith.constant 0 : i32
    %2 = arith.cmpi ne, %1, %c0_i32_0 : i32
    scf.if %2 {
      %cst_71 = arith.constant 0.000000e+00 : f32
      %75 = vector.broadcast %cst_71 : f32 to vector<2x10x40xf32>
      %c0_72 = arith.constant 0 : index
      %c0_73 = arith.constant 0 : index
      %c0_74 = arith.constant 0 : index
      %76 = vector.load %arg7[%c0_72, %c0_73, %c0_74] : memref<2x10x40xf32, #tpu.memory_space<vmem>>, vector<2x10x40xf32>
      tpu.vector_store %arg7[%c0_72, %c0_73, %c0_74], %75 {strides = array<i32>} : memref<2x10x40xf32, #tpu.memory_space<vmem>>, vector<2x10x40xf32>,
      %cst_75 = arith.constant 0.000000e+00 : f32
      %77 = vector.broadcast %cst_75 : f32 to vector<2x10x80xf32>
      %c0_76 = arith.constant 0 : index
      %c0_77 = arith.constant 0 : index
      %c0_78 = arith.constant 0 : index
      %78 = vector.load %arg8[%c0_76, %c0_77, %c0_78] : memref<2x10x80xf32, #tpu.memory_space<vmem>>, vector<2x10x80xf32>
      tpu.vector_store %arg8[%c0_76, %c0_77, %c0_78], %77 {strides = array<i32>} : memref<2x10x80xf32, #tpu.memory_space<vmem>>, vector<2x10x80xf32>,
    } else {
    }
    %c0 = arith.constant 0 : index
    %c0_1 = arith.constant 0 : index
    %c0_2 = arith.constant 0 : index
    %c0_3 = arith.constant 0 : index
    %3 = vector.load %arg1[%c0, %c0_1, %c0_2, %c0_3] : memref<4x2x8x32xf32, #tpu.memory_space<vmem>>, vector<1x2x8x32xf32>
    %4 = vector.shape_cast %3 : vector<1x2x8x32xf32> to vector<2x8x32xf32>
    %c1 = arith.constant 1 : index
    %c0_4 = arith.constant 0 : index
    %c0_5 = arith.constant 0 : index
    %c0_6 = arith.constant 0 : index
    %5 = vector.load %arg1[%c1, %c0_4, %c0_5, %c0_6] : memref<4x2x8x32xf32, #tpu.memory_space<vmem>>, vector<1x2x8x32xf32>
    %6 = vector.shape_cast %5 : vector<1x2x8x32xf32> to vector<2x8x32xf32>
    %7 = arith.maximumf %4, %6 : vector<2x8x32xf32>
    %c2 = arith.constant 2 : index
    %c0_7 = arith.constant 0 : index
    %c0_8 = arith.constant 0 : index
    %c0_9 = arith.constant 0 : index
    %8 = vector.load %arg1[%c2, %c0_7, %c0_8, %c0_9] : memref<4x2x8x32xf32, #tpu.memory_space<vmem>>, vector<1x2x8x32xf32>
    %9 = vector.shape_cast %8 : vector<1x2x8x32xf32> to vector<2x8x32xf32>
    %c3 = arith.constant 3 : index
    %c0_10 = arith.constant 0 : index
    %c0_11 = arith.constant 0 : index
    %c0_12 = arith.constant 0 : index
    %10 = vector.load %arg1[%c3, %c0_10, %c0_11, %c0_12] : memref<4x2x8x32xf32, #tpu.memory_space<vmem>>, vector<1x2x8x32xf32>
    %11 = vector.shape_cast %10 : vector<1x2x8x32xf32> to vector<2x8x32xf32>
    %12 = arith.maximumf %9, %11 : vector<2x8x32xf32>
    %13 = arith.maximumf %7, %12 : vector<2x8x32xf32>
    %c0_13 = arith.constant 0 : index
    %c1_14 = arith.constant 1 : index
    %c4 = arith.constant 4 : index
    %14 = vector.load %arg7[%c0_13, %c1_14, %c4] : memref<2x10x40xf32, #tpu.memory_space<vmem>>, vector<2x8x32xf32>
    tpu.vector_store %arg7[%c0_13, %c1_14, %c4], %13 {strides = array<i32>} : memref<2x10x40xf32, #tpu.memory_space<vmem>>, vector<2x8x32xf32>,
    %cst = arith.constant 0.000000e+00 : f32
    %15 = vector.broadcast %cst : f32 to vector<16x64xf32>
    %c0_15 = arith.constant 0 : index
    %c0_16 = arith.constant 0 : index
    %c0_17 = arith.constant 0 : index
    %16 = vector.load %arg7[%c0_15, %c0_16, %c0_17] : memref<2x10x40xf32, #tpu.memory_space<vmem>>, vector<2x8x40xf32>
    %17 = vector.shape_cast %16 : vector<2x8x40xf32> to vector<16x40xf32>
    %c0_18 = arith.constant 0 : index
    %c0_19 = arith.constant 0 : index
    %c0_20 = arith.constant 0 : index
    %18 = vector.load %arg2[%c0_18, %c0_19, %c0_20] : memref<3x40x64xf32, #tpu.memory_space<vmem>>, vector<1x40x64xf32>
    %19 = vector.shape_cast %18 : vector<1x40x64xf32> to vector<40x64xf32>
    %cst_21 = arith.constant dense<0.000000e+00> : vector<16x64xf32>
    %20 = tpu.matmul %17, %19, %cst_21 {dimension_numbers = #tpu.dot_dimension_numbers<[1], [0], [0], [1], [0, 0, 1, 1], [], []>} : vector<16x40xf32>, vector<40x64xf32>, vector<16x64xf32> -> vector<16x64xf32>
    %21 = arith.addf %15, %20 : vector<16x64xf32>
    %c0_22 = arith.constant 0 : index
    %c1_23 = arith.constant 1 : index
    %c0_24 = arith.constant 0 : index
    %22 = vector.load %arg7[%c0_22, %c1_23, %c0_24] : memref<2x10x40xf32, #tpu.memory_space<vmem>>, vector<2x8x40xf32>
    %23 = vector.shape_cast %22 : vector<2x8x40xf32> to vector<16x40xf32>
    %c1_25 = arith.constant 1 : index
    %c0_26 = arith.constant 0 : index
    %c0_27 = arith.constant 0 : index
    %24 = vector.load %arg2[%c1_25, %c0_26, %c0_27] : memref<3x40x64xf32, #tpu.memory_space<vmem>>, vector<1x40x64xf32>
    %25 = vector.shape_cast %24 : vector<1x40x64xf32> to vector<40x64xf32>
    %cst_28 = arith.constant dense<0.000000e+00> : vector<16x64xf32>
    %26 = tpu.matmul %23, %25, %cst_28 {dimension_numbers = #tpu.dot_dimension_numbers<[1], [0], [0], [1], [0, 0, 1, 1], [], []>} : vector<16x40xf32>, vector<40x64xf32>, vector<16x64xf32> -> vector<16x64xf32>
    %27 = arith.addf %21, %26 : vector<16x64xf32>
    %c0_29 = arith.constant 0 : index
    %c2_30 = arith.constant 2 : index
    %c0_31 = arith.constant 0 : index
    %28 = vector.load %arg7[%c0_29, %c2_30, %c0_31] : memref<2x10x40xf32, #tpu.memory_space<vmem>>, vector<2x8x40xf32>
    %29 = vector.shape_cast %28 : vector<2x8x40xf32> to vector<16x40xf32>
    %c2_32 = arith.constant 2 : index
    %c0_33 = arith.constant 0 : index
    %c0_34 = arith.constant 0 : index
    %30 = vector.load %arg2[%c2_32, %c0_33, %c0_34] : memref<3x40x64xf32, #tpu.memory_space<vmem>>, vector<1x40x64xf32>
    %31 = vector.shape_cast %30 : vector<1x40x64xf32> to vector<40x64xf32>
    %cst_35 = arith.constant dense<0.000000e+00> : vector<16x64xf32>
    %32 = tpu.matmul %29, %31, %cst_35 {dimension_numbers = #tpu.dot_dimension_numbers<[1], [0], [0], [1], [0, 0, 1, 1], [], []>} : vector<16x40xf32>, vector<40x64xf32>, vector<16x64xf32> -> vector<16x64xf32>
    %33 = arith.addf %27, %32 : vector<16x64xf32>
    %c0_36 = arith.constant 0 : index
    %c0_37 = arith.constant 0 : index
    %34 = vector.load %arg3[%c0_36, %c0_37] : memref<1x64xf32, #tpu.memory_space<vmem>>, vector<1x64xf32>
    %35 = vector.broadcast %34 : vector<1x64xf32> to vector<16x64xf32>
    %36 = arith.addf %33, %35 : vector<16x64xf32>
    %cst_38 = arith.constant 0.000000e+00 : f32
    %37 = vector.broadcast %cst_38 : f32 to vector<16x64xf32>
    %38 = arith.cmpf ogt, %36, %37 : vector<16x64xf32>
    %39 = math.exp %36 : vector<16x64xf32>
    %cst_39 = arith.constant 1.000000e+00 : f32
    %40 = vector.broadcast %cst_39 : f32 to vector<16x64xf32>
    %41 = arith.subf %39, %40 : vector<16x64xf32>
    %42 = arith.select %38, %36, %41 : vector<16x64xi1>, vector<16x64xf32>
    %43 = vector.shape_cast %42 : vector<16x64xf32> to vector<2x8x64xf32>
    %c0_40 = arith.constant 0 : index
    %c1_41 = arith.constant 1 : index
    %c8 = arith.constant 8 : index
    %44 = vector.load %arg8[%c0_40, %c1_41, %c8] : memref<2x10x80xf32, #tpu.memory_space<vmem>>, vector<2x8x64xf32>
    tpu.vector_store %arg8[%c0_40, %c1_41, %c8], %43 {strides = array<i32>} : memref<2x10x80xf32, #tpu.memory_space<vmem>>, vector<2x8x64xf32>,
    %cst_42 = arith.constant 0.000000e+00 : f32
    %45 = vector.broadcast %cst_42 : f32 to vector<16x64xf32>
    %c0_43 = arith.constant 0 : index
    %c0_44 = arith.constant 0 : index
    %c0_45 = arith.constant 0 : index
    %46 = vector.load %arg8[%c0_43, %c0_44, %c0_45] : memref<2x10x80xf32, #tpu.memory_space<vmem>>, vector<2x8x80xf32>
    %47 = vector.shape_cast %46 : vector<2x8x80xf32> to vector<16x80xf32>
    %c0_46 = arith.constant 0 : index
    %c0_47 = arith.constant 0 : index
    %c0_48 = arith.constant 0 : index
    %48 = vector.load %arg4[%c0_46, %c0_47, %c0_48] : memref<3x80x64xf32, #tpu.memory_space<vmem>>, vector<1x80x64xf32>
    %49 = vector.shape_cast %48 : vector<1x80x64xf32> to vector<80x64xf32>
    %cst_49 = arith.constant dense<0.000000e+00> : vector<16x64xf32>
    %50 = tpu.matmul %47, %49, %cst_49 {dimension_numbers = #tpu.dot_dimension_numbers<[1], [0], [0], [1], [0, 0, 1, 1], [], []>} : vector<16x80xf32>, vector<80x64xf32>, vector<16x64xf32> -> vector<16x64xf32>
    %51 = arith.addf %45, %50 : vector<16x64xf32>
    %c0_50 = arith.constant 0 : index
    %c1_51 = arith.constant 1 : index
    %c0_52 = arith.constant 0 : index
    %52 = vector.load %arg8[%c0_50, %c1_51, %c0_52] : memref<2x10x80xf32, #tpu.memory_space<vmem>>, vector<2x8x80xf32>
    %53 = vector.shape_cast %52 : vector<2x8x80xf32> to vector<16x80xf32>
    %c1_53 = arith.constant 1 : index
    %c0_54 = arith.constant 0 : index
    %c0_55 = arith.constant 0 : index
    %54 = vector.load %arg4[%c1_53, %c0_54, %c0_55] : memref<3x80x64xf32, #tpu.memory_space<vmem>>, vector<1x80x64xf32>
    %55 = vector.shape_cast %54 : vector<1x80x64xf32> to vector<80x64xf32>
    %cst_56 = arith.constant dense<0.000000e+00> : vector<16x64xf32>
    %56 = tpu.matmul %53, %55, %cst_56 {dimension_numbers = #tpu.dot_dimension_numbers<[1], [0], [0], [1], [0, 0, 1, 1], [], []>} : vector<16x80xf32>, vector<80x64xf32>, vector<16x64xf32> -> vector<16x64xf32>
    %57 = arith.addf %51, %56 : vector<16x64xf32>
    %c0_57 = arith.constant 0 : index
    %c2_58 = arith.constant 2 : index
    %c0_59 = arith.constant 0 : index
    %58 = vector.load %arg8[%c0_57, %c2_58, %c0_59] : memref<2x10x80xf32, #tpu.memory_space<vmem>>, vector<2x8x80xf32>
    %59 = vector.shape_cast %58 : vector<2x8x80xf32> to vector<16x80xf32>
    %c2_60 = arith.constant 2 : index
    %c0_61 = arith.constant 0 : index
    %c0_62 = arith.constant 0 : index
    %60 = vector.load %arg4[%c2_60, %c0_61, %c0_62] : memref<3x80x64xf32, #tpu.memory_space<vmem>>, vector<1x80x64xf32>
    %61 = vector.shape_cast %60 : vector<1x80x64xf32> to vector<80x64xf32>
    %cst_63 = arith.constant dense<0.000000e+00> : vector<16x64xf32>
    %62 = tpu.matmul %59, %61, %cst_63 {dimension_numbers = #tpu.dot_dimension_numbers<[1], [0], [0], [1], [0, 0, 1, 1], [], []>} : vector<16x80xf32>, vector<80x64xf32>, vector<16x64xf32> -> vector<16x64xf32>
    %63 = arith.addf %57, %62 : vector<16x64xf32>
    %c0_64 = arith.constant 0 : index
    %c0_65 = arith.constant 0 : index
    %64 = vector.load %arg5[%c0_64, %c0_65] : memref<1x64xf32, #tpu.memory_space<vmem>>, vector<1x64xf32>
    %65 = vector.broadcast %64 : vector<1x64xf32> to vector<16x64xf32>
    %66 = arith.addf %63, %65 : vector<16x64xf32>
    %cst_66 = arith.constant 0.000000e+00 : f32
    %67 = vector.broadcast %cst_66 : f32 to vector<16x64xf32>
    %68 = arith.cmpf ogt, %66, %67 : vector<16x64xf32>
    %69 = math.exp %66 : vector<16x64xf32>
    %cst_67 = arith.constant 1.000000e+00 : f32
    %70 = vector.broadcast %cst_67 : f32 to vector<16x64xf32>
    %71 = arith.subf %69, %70 : vector<16x64xf32>
    %72 = arith.select %68, %66, %71 : vector<16x64xi1>, vector<16x64xf32>
    %73 = vector.shape_cast %72 : vector<16x64xf32> to vector<2x8x64xf32>
    %c0_68 = arith.constant 0 : index
    %c0_69 = arith.constant 0 : index
    %c0_70 = arith.constant 0 : index
    %74 = vector.load %arg6[%c0_68, %c0_69, %c0_70] : memref<2x8x64xf32, #tpu.memory_space<vmem>>, vector<2x8x64xf32>
    tpu.vector_store %arg6[%c0_68, %c0_69, %c0_70], %73 {strides = array<i32>} : memref<2x8x64xf32, #tpu.memory_space<vmem>>, vector<2x8x64xf32>,
    return
  }
  func.func @transform_0(%arg0: i32) -> (i32, i32, i32, i32) {
    %c0_i32 = arith.constant 0 : i32
    %c0_i32_0 = arith.constant 0 : i32
    %c0_i32_1 = arith.constant 0 : i32
    %c0_i32_2 = arith.constant 0 : i32
    return %c0_i32, %arg0, %c0_i32_0, %c0_i32_1 : i32, i32, i32, i32
  }
  func.func @transform_1(%arg0: i32) -> (i32, i32, i32) {
    %c0_i32 = arith.constant 0 : i32
    %c0_i32_0 = arith.constant 0 : i32
    %c0_i32_1 = arith.constant 0 : i32
    %c0_i32_2 = arith.constant 0 : i32
    return %c0_i32, %c0_i32_0, %c0_i32_1 : i32, i32, i32
  }
  func.func @transform_2(%arg0: i32) -> (i32, i32) {
    %c0_i32 = arith.constant 0 : i32
    %c0_i32_0 = arith.constant 0 : i32
    %c0_i32_1 = arith.constant 0 : i32
    return %c0_i32, %c0_i32_0 : i32, i32
  }
  func.func @transform_3(%arg0: i32) -> (i32, i32, i32) {
    %c0_i32 = arith.constant 0 : i32
    %c0_i32_0 = arith.constant 0 : i32
    %c0_i32_1 = arith.constant 0 : i32
    %c0_i32_2 = arith.constant 0 : i32
    return %c0_i32, %c0_i32_0, %c0_i32_1 : i32, i32, i32
  }
  func.func @transform_4(%arg0: i32) -> (i32, i32) {
    %c0_i32 = arith.constant 0 : i32
    %c0_i32_0 = arith.constant 0 : i32
    %c0_i32_1 = arith.constant 0 : i32
    return %c0_i32, %c0_i32_0 : i32, i32
  }
  func.func @transform_5(%arg0: i32) -> (i32, i32, i32) {
    %c0_i32 = arith.constant 0 : i32
    %c0_i32_0 = arith.constant 0 : i32
    %c0_i32_1 = arith.constant 0 : i32
    return %arg0, %c0_i32, %c0_i32_0 : i32, i32, i32
  }
}

</mosaic_0001>

<llo_original>
// kernel: tpu_custom_call.1
$region0: #{tpu_custom_call.1}
  #allocation0 [shape = 'u32[]', space=smem, size = 0x4, offset = 0x4, fixed_abs, tag = 'smem constant byte address 0x4 - core index']
  #allocation1 [shape = 'u32[144,128]{1,0:T(1,128)}', space=vmem, size = 0x12000, scoped, tag = 'internal scratch']
  #allocation2 [shape = 'f32[2,10,40]{2,1,0:T(8,128)}', space=vmem, size = 0x4000, scoped, tag = 'scratch operand']
  #allocation3 [shape = 'f32[2,10,80]{2,1,0:T(8,128)}', space=vmem, size = 0x4000, scoped, tag = 'scratch operand']
  %s0 = inlined_call_operand.vmem [shape: f32[4,2,8,32], index: 0, kind: input, shape index: {}]
  %s1 = inlined_call_operand.vmem [shape: f32[3,40,64], index: 1, kind: input, shape index: {}]
  %s2 = inlined_call_operand.vmem [shape: f32[1,64], index: 2, kind: input, shape index: {}]
  %s3 = inlined_call_operand.vmem [shape: f32[3,80,64], index: 3, kind: input, shape index: {}]
  %s4 = inlined_call_operand.vmem [shape: f32[1,64], index: 4, kind: input, shape index: {}]
  %s5 = inlined_call_operand.hbm [shape: f32[2,8,64], index: 5, kind: output, shape index: {}]
  %s6 = sld [smem:[#allocation0]]
  $region34: #{tpu_custom_call.1} parent=0
    _
  %s8 = ssub.s32 1, %s6
  %s9 = scalar_select 0, %s8, %s6
  $region1: #{tpu_custom_call.1} parent=0
    #allocation4 [shape = 'u8[8192]{0}', space=vmem, size = 0x2000, scoped, tag = 'output window, operand 0, single buffered']
    #allocation5 [shape = 's32[1]{0}', space=sflag, size = 0x4, scoped, tag = 'scoped memory for tpu_custom_call.1']
    %10 = vsyncpa [#allocation5], 0
    // Predicated region
    $region2: #{tpu_custom_call.1} parent=1 // pred_check
      _
    $region3: #{tpu_custom_call.1} parent=1 // pred_check_branch
      %12 = sbr.rel (0) target = $region5
    $region4: #{tpu_custom_call.1} parent=1 // pred_region
      _
    $region5: #{tpu_custom_call.1} parent=1 // pred_fallthru
      _
    // Predicated region
    $region6: #{tpu_custom_call.1} parent=1 // pred_check
      _
    $region7: #{tpu_custom_call.1} parent=1 // pred_check_branch
      %14 = sbr.rel (0) target = $region9
    $region8: #{tpu_custom_call.1} parent=1 // pred_region
      _
    $region9: #{tpu_custom_call.1} parent=1 // pred_fallthru
      _
    // Predicated region
    $region10: #{tpu_custom_call.1} parent=1 // pred_check
      _
    $region11: #{tpu_custom_call.1} parent=1 // pred_check_branch
      %16 = sbr.rel (0) target = $region13
    $region12: #{tpu_custom_call.1} parent=1 // pred_region
      _
    $region13: #{tpu_custom_call.1} parent=1 // pred_fallthru
      _
    // Predicated region
    $region14: #{tpu_custom_call.1} parent=1 // pred_check
      _
    $region15: #{tpu_custom_call.1} parent=1 // pred_check_branch
      %18 = sbr.rel (0) target = $region17
    $region16: #{tpu_custom_call.1} parent=1 // pred_region
      _
    $region17: #{tpu_custom_call.1} parent=1 // pred_fallthru
      _
    // Predicated region
    $region18: #{tpu_custom_call.1} parent=1 // pred_check
      _
    $region19: #{tpu_custom_call.1} parent=1 // pred_check_branch
      %20 = sbr.rel (0) target = $region21
    $region20: #{tpu_custom_call.1} parent=1 // pred_region
      _
    $region21: #{tpu_custom_call.1} parent=1 // pred_fallthru
      _
    %p21 = scmp.eq.s32.totalorder 0, 0
    // Predicated region
    $region22: #{tpu_custom_call.1} parent=1 // pred_check
      %p22 = pneg %p21
    $region23: #{tpu_custom_call.1} parent=1 // pred_check_branch
      %24 = sbr.rel (%p22) target = $region25
    $region24: #{tpu_custom_call.1} parent=1 // pred_region
      %vm25 = vcmask 326656
      %26 = vst.msk [vmem:[#allocation2] sm:$0xff] %vm25, 0.0
      %vm27 = vcmask 320512
      %28 = vst.msk [vmem:[#allocation2 + $0x8] sm:$0x3] %vm27, 0.0
      %29 = vst.msk [vmem:[#allocation2 + $0x10] sm:$0xff] %vm25, 0.0
      %30 = vst.msk [vmem:[#allocation2 + $0x18] sm:$0x3] %vm27, 0.0
      %vm31 = vcmask 654336
      %32 = vst.msk [vmem:[#allocation3] sm:$0xff] %vm31, 0.0
      %vm33 = vcmask 648192
      %34 = vst.msk [vmem:[#allocation3 + $0x8] sm:$0x3] %vm33, 0.0
      %35 = vst.msk [vmem:[#allocation3 + $0x10] sm:$0xff] %vm31, 0.0
      %36 = vst.msk [vmem:[#allocation3 + $0x18] sm:$0x3] %vm33, 0.0
    $region25: #{tpu_custom_call.1} parent=1 // pred_fallthru
      _
    %v37 = vld [vmem:[%s0] sm:$0xff]
    %v38 = vld [vmem:[%s0 + $0x8] sm:$0xff]
    %s39 = scalar_lea.vmem %s0, 16
    %v40 = vld [vmem:[%s39] sm:$0xff]
    %v41 = vld [vmem:[%s39 + $0x8] sm:$0xff]
    %v42 = vmax.f32 %v37, %v40
    %v43 = vmax.f32 %v38, %v41
    %s44 = scalar_lea.vmem %s0, 32
    %v45 = vld [vmem:[%s44] sm:$0xff]
    %v46 = vld [vmem:[%s44 + $0x8] sm:$0xff]
    %s47 = scalar_lea.vmem %s0, 48
    %v48 = vld [vmem:[%s47] sm:$0xff]
    %v49 = vld [vmem:[%s47 + $0x8] sm:$0xff]
    %v50 = vmax.f32 %v45, %v48
    %v51 = vmax.f32 %v46, %v49
    %v52 = vmax.f32 %v42, %v50
    %v53 = vmax.f32 %v43, %v51
    %56 = vrot.lane.b32.xlu0 %v52, 4
    %v57 = vpop.permute.xlu0 %56
    %58 = vrot.lane.b32.xlu0 %v53, 4
    %v59 = vpop.permute.xlu0 %58
    %vm62 = vcmask 293920
    %63 = vst.msk [vmem:[#allocation2 + $0x1] sm:$0xff] %vm62, %v57
    %64 = vst.msk [vmem:[#allocation2 + $0x11] sm:$0xff] %vm62, %v59
    %v65 = vld [vmem:[#allocation2] sm:$0xff]
    %v66 = vld [vmem:[#allocation2 + $0x10] sm:$0xff]
    %v67 = vld [vmem:[%s1] sm:$0xff]
    %v68 = vld [vmem:[%s1 + $0x8] sm:$0xff]
    %v69 = vld [vmem:[%s1 + $0x10] sm:$0xff]
    %v70 = vld [vmem:[%s1 + $0x18] sm:$0xff]
    %v71 = vld [vmem:[%s1 + $0x20] sm:$0xff]
    %v72 = vld [vmem:[#allocation2 + $0x1] sm:$0xff]
    %v73 = vld [vmem:[#allocation2 + $0x11] sm:$0xff]
    %s74 = scalar_lea.vmem %s1, 40
    %v75 = vld [vmem:[%s74] sm:$0xff]
    %v76 = vld [vmem:[%s74 + $0x8] sm:$0xff]
    %v77 = vld [vmem:[%s74 + $0x10] sm:$0xff]
    %v78 = vld [vmem:[%s74 + $0x18] sm:$0xff]
    %v79 = vld [vmem:[%s74 + $0x20] sm:$0xff]
    %vm80 = vcmask 326656
    %v82 = vsel %vm80, %v72, 0
    %v85 = vsel %vm80, %v73, 0
    %87 = vmatprep.subr.mxu0 0.0
    %88 = vmatpush1.msra.mxu0 %v75
    %89 = vmatprep.subr.mxu0 0.0
    %90 = vmatpush1.msra.mxu0 %v76
    %91 = vmatprep.subr.mxu0 0.0
    %92 = vmatpush1.msra.mxu0 %v77
    %93 = vmatprep.subr.mxu0 0.0
    %94 = vmatpush1.msra.mxu0 %v78
    %95 = vmatprep.subr.mxu0 0.0
    %96 = vmatpush1.msra.mxu0 %v79
    %97 = vmatprep.subr.mxu0 0.0
    %98 = vmatpush1.msra.mxu0 0.0
    %99 = vmatprep.subr.mxu0 0.0
    %100 = vmatpush1.msra.mxu0 0.0
    %101 = vmatprep.subr.mxu0 0.0
    %102 = vmatpush1.msra.mxu0 0.0
    %103 = vmatprep.subr.mxu0 0.0
    %104 = vmatpush1.msra.mxu0 0.0
    %105 = vmatprep.subr.mxu0 0.0
    %106 = vmatpush1.msra.mxu0 0.0
    %107 = vmatprep.subr.mxu0 0.0
    %108 = vmatpush1.msra.mxu0 0.0
    %109 = vmatprep.subr.mxu0 0.0
    %110 = vmatpush1.msra.mxu0 0.0
    %111 = vmatprep.subr.mxu0 0.0
    %112 = vmatpush1.msra.mxu0 0.0
    %113 = vmatprep.subr.mxu0 0.0
    %114 = vmatpush1.msra.mxu0 0.0
    %115 = vmatprep.subr.mxu0 0.0
    %116 = vmatpush1.msra.mxu0 0.0
    %117 = vmatprep.subr.mxu0 0.0
    %118 = vmatpush1.msra.mxu0 0.0
    %119 = vmatprep.subr.mxu0 0.0
    %120 = vmatpush1.msra.mxu0 0.0
    %121 = vmatprep.subr.mxu0 0.0
    %122 = vmatpush1.msra.mxu0 0.0
    %123 = vmatprep.subr.mxu0 0.0
    %124 = vmatpush1.msra.mxu0 0.0
    %125 = vmatprep.subr.mxu0 0.0
    %126 = vmatpush1.msra.mxu0 0.0
    %127 = vmatprep.subr.mxu0 0.0
    %128 = vmatpush1.msra.mxu0 0.0
    %129 = vmatprep.subr.mxu0 0.0
    %130 = vmatpush1.msra.mxu0 0.0
    %131 = vmatprep.subr.mxu0 0.0
    %132 = vmatpush1.msra.mxu0 0.0
    %133 = vmatprep.subr.mxu0 0.0
    %134 = vmatpush1.msra.mxu0 0.0
    %135 = vmatprep.subr.mxu0 0.0
    %136 = vmatpush1.msra.mxu0 0.0
    %137 = vmatprep.subr.mxu0 0.0
    %138 = vmatpush1.msra.mxu0 0.0
    %139 = vmatprep.subr.mxu0 0.0
    %140 = vmatpush1.msra.mxu0 0.0
    %141 = vmatprep.subr.mxu0 0.0
    %142 = vmatpush1.msra.mxu0 0.0
    %143 = vmatprep.subr.mxu0 0.0
    %144 = vmatpush1.msra.mxu0 0.0
    %145 = vmatprep.subr.mxu0 0.0
    %146 = vmatpush1.msra.mxu0 0.0
    %147 = vmatprep.subr.mxu0 0.0
    %148 = vmatpush1.msra.mxu0 0.0
    %149 = vmatprep.subr.mxu0 0.0
    %150 = vmatpush1.msra.mxu0 0.0
    %151 = vmatprep.mubr.f32.mxu0 0.0
    %152 = vmatmul.mubr.f32.gmra.mrb[0].mxu0 %v82
    %v153 = vpop.f32.mrb[0].mxu0
    %v154 = vadd.f32 0.0, %v153
    %v155 = vpop.f32.mrb[0].mxu0
    %156 = vmatprep.mubr.f32.mxu0 0.0
    %157 = vmatmul.mubr.f32.gmra.mrb[0].mxu0 %v85
    %v158 = vpop.f32.mrb[0].mxu0
    %v159 = vadd.f32 0.0, %v158
    %v160 = vpop.f32.mrb[0].mxu0
    %161 = vdwg.mxu0
    %v163 = vsel %vm80, %v65, 0
    %v166 = vsel %vm80, %v66, 0
    %168 = vmatprep.subr.mxu0 0.0
    %169 = vmatpush1.msra.mxu0 %v67
    %170 = vmatprep.subr.mxu0 0.0
    %171 = vmatpush1.msra.mxu0 %v68
    %172 = vmatprep.subr.mxu0 0.0
    %173 = vmatpush1.msra.mxu0 %v69
    %174 = vmatprep.subr.mxu0 0.0
    %175 = vmatpush1.msra.mxu0 %v70
    %176 = vmatprep.subr.mxu0 0.0
    %177 = vmatpush1.msra.mxu0 %v71
    %178 = vmatprep.subr.mxu0 0.0
    %179 = vmatpush1.msra.mxu0 0.0
    %180 = vmatprep.subr.mxu0 0.0
    %181 = vmatpush1.msra.mxu0 0.0
    %182 = vmatprep.subr.mxu0 0.0
    %183 = vmatpush1.msra.mxu0 0.0
    %184 = vmatprep.subr.mxu0 0.0
    %185 = vmatpush1.msra.mxu0 0.0
    %186 = vmatprep.subr.mxu0 0.0
    %187 = vmatpush1.msra.mxu0 0.0
    %188 = vmatprep.subr.mxu0 0.0
    %189 = vmatpush1.msra.mxu0 0.0
    %190 = vmatprep.subr.mxu0 0.0
    %191 = vmatpush1.msra.mxu0 0.0
    %192 = vmatprep.subr.mxu0 0.0
    %193 = vmatpush1.msra.mxu0 0.0
    %194 = vmatprep.subr.mxu0 0.0
    %195 = vmatpush1.msra.mxu0 0.0
    %196 = vmatprep.subr.mxu0 0.0
    %197 = vmatpush1.msra.mxu0 0.0
    %198 = vmatprep.subr.mxu0 0.0
    %199 = vmatpush1.msra.mxu0 0.0
    %200 = vmatprep.subr.mxu0 0.0
    %201 = vmatpush1.msra.mxu0 0.0
    %202 = vmatprep.subr.mxu0 0.0
    %203 = vmatpush1.msra.mxu0 0.0
    %204 = vmatprep.subr.mxu0 0.0
    %205 = vmatpush1.msra.mxu0 0.0
    %206 = vmatprep.subr.mxu0 0.0
    %207 = vmatpush1.msra.mxu0 0.0
    %208 = vmatprep.subr.mxu0 0.0
    %209 = vmatpush1.msra.mxu0 0.0
    %210 = vmatprep.subr.mxu0 0.0
    %211 = vmatpush1.msra.mxu0 0.0
    %212 = vmatprep.subr.mxu0 0.0
    %213 = vmatpush1.msra.mxu0 0.0
    %214 = vmatprep.subr.mxu0 0.0
    %215 = vmatpush1.msra.mxu0 0.0
    %216 = vmatprep.subr.mxu0 0.0
    %217 = vmatpush1.msra.mxu0 0.0
    %218 = vmatprep.subr.mxu0 0.0
    %219 = vmatpush1.msra.mxu0 0.0
    %220 = vmatprep.subr.mxu0 0.0
    %221 = vmatpush1.msra.mxu0 0.0
    %222 = vmatprep.subr.mxu0 0.0
    %223 = vmatpush1.msra.mxu0 0.0
    %224 = vmatprep.subr.mxu0 0.0
    %225 = vmatpush1.msra.mxu0 0.0
    %226 = vmatprep.subr.mxu0 0.0
    %227 = vmatpush1.msra.mxu0 0.0
    %228 = vmatprep.subr.mxu0 0.0
    %229 = vmatpush1.msra.mxu0 0.0
    %230 = vmatprep.subr.mxu0 0.0
    %231 = vmatpush1.msra.mxu0 0.0
    %232 = vmatprep.mubr.f32.mxu0 0.0
    %233 = vmatmul.mubr.f32.gmra.mrb[0].mxu0 %v163
    %v234 = vpop.f32.mrb[0].mxu0
    %v235 = vadd.f32 %v154, %v234
    %v236 = vpop.f32.mrb[0].mxu0
    %237 = vmatprep.mubr.f32.mxu0 0.0
    %238 = vmatmul.mubr.f32.gmra.mrb[0].mxu0 %v166
    %v239 = vpop.f32.mrb[0].mxu0
    %v240 = vadd.f32 %v159, %v239
    %v241 = vpop.f32.mrb[0].mxu0
    %242 = vdwg.mxu0
    %v243 = vld [vmem:[#allocation2 + $0x2] sm:$0xff]
    %v244 = vld [vmem:[#allocation2 + $0x12] sm:$0xff]
    %s245 = scalar_lea.vmem %s1, 80
    %v246 = vld [vmem:[%s245] sm:$0xff]
    %v247 = vld [vmem:[%s245 + $0x8] sm:$0xff]
    %v248 = vld [vmem:[%s245 + $0x10] sm:$0xff]
    %v249 = vld [vmem:[%s245 + $0x18] sm:$0xff]
    %v250 = vld [vmem:[%s245 + $0x20] sm:$0xff]
    %v252 = vsel %vm80, %v243, 0
    %v255 = vsel %vm80, %v244, 0
    %257 = vmatprep.subr.mxu0 0.0
    %258 = vmatpush1.msra.mxu0 %v246
    %259 = vmatprep.subr.mxu0 0.0
    %260 = vmatpush1.msra.mxu0 %v247
    %261 = vmatprep.subr.mxu0 0.0
    %262 = vmatpush1.msra.mxu0 %v248
    %263 = vmatprep.subr.mxu0 0.0
    %264 = vmatpush1.msra.mxu0 %v249
    %265 = vmatprep.subr.mxu0 0.0
    %266 = vmatpush1.msra.mxu0 %v250
    %267 = vmatprep.subr.mxu0 0.0
    %268 = vmatpush1.msra.mxu0 0.0
    %269 = vmatprep.subr.mxu0 0.0
    %270 = vmatpush1.msra.mxu0 0.0
    %271 = vmatprep.subr.mxu0 0.0
    %272 = vmatpush1.msra.mxu0 0.0
    %273 = vmatprep.subr.mxu0 0.0
    %274 = vmatpush1.msra.mxu0 0.0
    %275 = vmatprep.subr.mxu0 0.0
    %276 = vmatpush1.msra.mxu0 0.0
    %277 = vmatprep.subr.mxu0 0.0
    %278 = vmatpush1.msra.mxu0 0.0
    %279 = vmatprep.subr.mxu0 0.0
    %280 = vmatpush1.msra.mxu0 0.0
    %281 = vmatprep.subr.mxu0 0.0
    %282 = vmatpush1.msra.mxu0 0.0
    %283 = vmatprep.subr.mxu0 0.0
    %284 = vmatpush1.msra.mxu0 0.0
    %285 = vmatprep.subr.mxu0 0.0
    %286 = vmatpush1.msra.mxu0 0.0
    %287 = vmatprep.subr.mxu0 0.0
    %288 = vmatpush1.msra.mxu0 0.0
    %289 = vmatprep.subr.mxu0 0.0
    %290 = vmatpush1.msra.mxu0 0.0
    %291 = vmatprep.subr.mxu0 0.0
    %292 = vmatpush1.msra.mxu0 0.0
    %293 = vmatprep.subr.mxu0 0.0
    %294 = vmatpush1.msra.mxu0 0.0
    %295 = vmatprep.subr.mxu0 0.0
    %296 = vmatpush1.msra.mxu0 0.0
    %297 = vmatprep.subr.mxu0 0.0
    %298 = vmatpush1.msra.mxu0 0.0
    %299 = vmatprep.subr.mxu0 0.0
    %300 = vmatpush1.msra.mxu0 0.0
    %301 = vmatprep.subr.mxu0 0.0
    %302 = vmatpush1.msra.mxu0 0.0
    %303 = vmatprep.subr.mxu0 0.0
    %304 = vmatpush1.msra.mxu0 0.0
    %305 = vmatprep.subr.mxu0 0.0
    %306 = vmatpush1.msra.mxu0 0.0
    %307 = vmatprep.subr.mxu0 0.0
    %308 = vmatpush1.msra.mxu0 0.0
    %309 = vmatprep.subr.mxu0 0.0
    %310 = vmatpush1.msra.mxu0 0.0
    %311 = vmatprep.subr.mxu0 0.0
    %312 = vmatpush1.msra.mxu0 0.0
    %313 = vmatprep.subr.mxu0 0.0
    %314 = vmatpush1.msra.mxu0 0.0
    %315 = vmatprep.subr.mxu0 0.0
    %316 = vmatpush1.msra.mxu0 0.0
    %317 = vmatprep.subr.mxu0 0.0
    %318 = vmatpush1.msra.mxu0 0.0
    %319 = vmatprep.subr.mxu0 0.0
    %320 = vmatpush1.msra.mxu0 0.0
    %321 = vmatprep.mubr.f32.mxu0 0.0
    %322 = vmatmul.mubr.f32.gmra.mrb[0].mxu0 %v252
    %v323 = vpop.f32.mrb[0].mxu0
    %v324 = vadd.f32 0.0, %v323
    %v325 = vpop.f32.mrb[0].mxu0
    %326 = vmatprep.mubr.f32.mxu0 0.0
    %327 = vmatmul.mubr.f32.gmra.mrb[0].mxu0 %v255
    %v328 = vpop.f32.mrb[0].mxu0
    %v329 = vadd.f32 0.0, %v328
    %v330 = vpop.f32.mrb[0].mxu0
    %331 = vdwg.mxu0
    %v332 = vadd.f32 %v235, %v324
    %v333 = vadd.f32 %v240, %v329
    %v334 = vld [vmem:[%s2] sm:$0x1]
    %v336 = vlaneseq
    %v337 = vshrl.u32 %v336, 7
    %v338 = vsub.s32 0, %v337
    %v339 = vrot.slane %v334, %v338
    %v341 = vadd.f32 %v332, %v339
    %v342 = vadd.f32 %v333, %v339
    %vm343 = vcmp.gt.f32.partialorder %v341, 0.0
    %vm344 = vcmp.gt.f32.partialorder %v342, 0.0
    %v345 = vmul.f32 %v341, 1.442695
    %v346 = vpow.pop %v345
    %v347 = vmul.f32 %v342, 1.442695
    %v348 = vpow.pop %v347
    %v349 = vsub.f32 %v346, 1.0
    %v350 = vsub.f32 %v348, 1.0
    %v351 = vsel %vm343, %v341, %v349
    %v352 = vsel %vm344, %v342, %v350
    %355 = vrot.lane.b32.xlu0 %v351, 8
    %v356 = vpop.permute.xlu0 %355
    %357 = vrot.lane.b32.xlu0 %v352, 8
    %v358 = vpop.permute.xlu0 %357
    %vm361 = vcmask 588864
    %362 = vst.msk [vmem:[#allocation3 + $0x1] sm:$0xff] %vm361, %v356
    %363 = vst.msk [vmem:[#allocation3 + $0x11] sm:$0xff] %vm361, %v358
    %v364 = vld [vmem:[#allocation3] sm:$0xff]
    %v365 = vld [vmem:[#allocation3 + $0x10] sm:$0xff]
    %v366 = vld [vmem:[%s3] sm:$0xff]
    %v367 = vld [vmem:[%s3 + $0x8] sm:$0xff]
    %v368 = vld [vmem:[%s3 + $0x10] sm:$0xff]
    %v369 = vld [vmem:[%s3 + $0x18] sm:$0xff]
    %v370 = vld [vmem:[%s3 + $0x20] sm:$0xff]
    %v371 = vld [vmem:[%s3 + $0x28] sm:$0xff]
    %v372 = vld [vmem:[%s3 + $0x30] sm:$0xff]
    %v373 = vld [vmem:[%s3 + $0x38] sm:$0xff]
    %v374 = vld [vmem:[%s3 + $0x40] sm:$0xff]
    %v375 = vld [vmem:[%s3 + $0x48] sm:$0xff]
    %v376 = vld [vmem:[#allocation3 + $0x1] sm:$0xff]
    %v377 = vld [vmem:[#allocation3 + $0x11] sm:$0xff]
    %s378 = scalar_lea.vmem %s3, 80
    %v379 = vld [vmem:[%s378] sm:$0xff]
    %v380 = vld [vmem:[%s378 + $0x8] sm:$0xff]
    %v381 = vld [vmem:[%s378 + $0x10] sm:$0xff]
    %v382 = vld [vmem:[%s378 + $0x18] sm:$0xff]
    %v383 = vld [vmem:[%s378 + $0x20] sm:$0xff]
    %v384 = vld [vmem:[%s378 + $0x28] sm:$0xff]
    %v385 = vld [vmem:[%s378 + $0x30] sm:$0xff]
    %v386 = vld [vmem:[%s378 + $0x38] sm:$0xff]
    %v387 = vld [vmem:[%s378 + $0x40] sm:$0xff]
    %v388 = vld [vmem:[%s378 + $0x48] sm:$0xff]
    %vm389 = vcmask 654336
    %v391 = vsel %vm389, %v376, 0
    %v394 = vsel %vm389, %v377, 0
    %396 = vmatprep.subr.mxu0 0.0
    %397 = vmatpush1.msra.mxu0 %v379
    %398 = vmatprep.subr.mxu0 0.0
    %399 = vmatpush1.msra.mxu0 %v380
    %400 = vmatprep.subr.mxu0 0.0
    %401 = vmatpush1.msra.mxu0 %v381
    %402 = vmatprep.subr.mxu0 0.0
    %403 = vmatpush1.msra.mxu0 %v382
    %404 = vmatprep.subr.mxu0 0.0
    %405 = vmatpush1.msra.mxu0 %v383
    %406 = vmatprep.subr.mxu0 0.0
    %407 = vmatpush1.msra.mxu0 %v384
    %408 = vmatprep.subr.mxu0 0.0
    %409 = vmatpush1.msra.mxu0 %v385
    %410 = vmatprep.subr.mxu0 0.0
    %411 = vmatpush1.msra.mxu0 %v386
    %412 = vmatprep.subr.mxu0 0.0
    %413 = vmatpush1.msra.mxu0 %v387
    %414 = vmatprep.subr.mxu0 0.0
    %415 = vmatpush1.msra.mxu0 %v388
    %416 = vmatprep.subr.mxu0 0.0
    %417 = vmatpush1.msra.mxu0 0.0
    %418 = vmatprep.subr.mxu0 0.0
    %419 = vmatpush1.msra.mxu0 0.0
    %420 = vmatprep.subr.mxu0 0.0
    %421 = vmatpush1.msra.mxu0 0.0
    %422 = vmatprep.subr.mxu0 0.0
    %423 = vmatpush1.msra.mxu0 0.0
    %424 = vmatprep.subr.mxu0 0.0
    %425 = vmatpush1.msra.mxu0 0.0
    %426 = vmatprep.subr.mxu0 0.0
    %427 = vmatpush1.msra.mxu0 0.0
    %428 = vmatprep.subr.mxu0 0.0
    %429 = vmatpush1.msra.mxu0 0.0
    %430 = vmatprep.subr.mxu0 0.0
    %431 = vmatpush1.msra.mxu0 0.0
    %432 = vmatprep.subr.mxu0 0.0
    %433 = vmatpush1.msra.mxu0 0.0
    %434 = vmatprep.subr.mxu0 0.0
    %435 = vmatpush1.msra.mxu0 0.0
    %436 = vmatprep.subr.mxu0 0.0
    %437 = vmatpush1.msra.mxu0 0.0
    %438 = vmatprep.subr.mxu0 0.0
    %439 = vmatpush1.msra.mxu0 0.0
    %440 = vmatprep.subr.mxu0 0.0
    %441 = vmatpush1.msra.mxu0 0.0
    %442 = vmatprep.subr.mxu0 0.0
    %443 = vmatpush1.msra.mxu0 0.0
    %444 = vmatprep.subr.mxu0 0.0
    %445 = vmatpush1.msra.mxu0 0.0
    %446 = vmatprep.subr.mxu0 0.0
    %447 = vmatpush1.msra.mxu0 0.0
    %448 = vmatprep.subr.mxu0 0.0
    %449 = vmatpush1.msra.mxu0 0.0
    %450 = vmatprep.subr.mxu0 0.0
    %451 = vmatpush1.msra.mxu0 0.0
    %452 = vmatprep.subr.mxu0 0.0
    %453 = vmatpush1.msra.mxu0 0.0
    %454 = vmatprep.subr.mxu0 0.0
    %455 = vmatpush1.msra.mxu0 0.0
    %456 = vmatprep.subr.mxu0 0.0
    %457 = vmatpush1.msra.mxu0 0.0
    %458 = vmatprep.subr.mxu0 0.0
    %459 = vmatpush1.msra.mxu0 0.0
    %460 = vmatprep.mubr.f32.mxu0 0.0
    %461 = vmatmul.mubr.f32.gmra.mrb[0].mxu0 %v391
    %v462 = vpop.f32.mrb[0].mxu0
    %v463 = vadd.f32 0.0, %v462
    %v464 = vpop.f32.mrb[0].mxu0
    %465 = vmatprep.mubr.f32.mxu0 0.0
    %466 = vmatmul.mubr.f32.gmra.mrb[0].mxu0 %v394
    %v467 = vpop.f32.mrb[0].mxu0
    %v468 = vadd.f32 0.0, %v467
    %v469 = vpop.f32.mrb[0].mxu0
    %470 = vdwg.mxu0
    %v472 = vsel %vm389, %v364, 0
    %v475 = vsel %vm389, %v365, 0
    %477 = vmatprep.subr.mxu0 0.0
    %478 = vmatpush1.msra.mxu0 %v366
    %479 = vmatprep.subr.mxu0 0.0
    %480 = vmatpush1.msra.mxu0 %v367
    %481 = vmatprep.subr.mxu0 0.0
    %482 = vmatpush1.msra.mxu0 %v368
    %483 = vmatprep.subr.mxu0 0.0
    %484 = vmatpush1.msra.mxu0 %v369
    %485 = vmatprep.subr.mxu0 0.0
    %486 = vmatpush1.msra.mxu0 %v370
    %487 = vmatprep.subr.mxu0 0.0
    %488 = vmatpush1.msra.mxu0 %v371
    %489 = vmatprep.subr.mxu0 0.0
    %490 = vmatpush1.msra.mxu0 %v372
    %491 = vmatprep.subr.mxu0 0.0
    %492 = vmatpush1.msra.mxu0 %v373
    %493 = vmatprep.subr.mxu0 0.0
    %494 = vmatpush1.msra.mxu0 %v374
    %495 = vmatprep.subr.mxu0 0.0
    %496 = vmatpush1.msra.mxu0 %v375
    %497 = vmatprep.subr.mxu0 0.0
    %498 = vmatpush1.msra.mxu0 0.0
    %499 = vmatprep.subr.mxu0 0.0
    %500 = vmatpush1.msra.mxu0 0.0
    %501 = vmatprep.subr.mxu0 0.0
    %502 = vmatpush1.msra.mxu0 0.0
    %503 = vmatprep.subr.mxu0 0.0
    %504 = vmatpush1.msra.mxu0 0.0
    %505 = vmatprep.subr.mxu0 0.0
    %506 = vmatpush1.msra.mxu0 0.0
    %507 = vmatprep.subr.mxu0 0.0
    %508 = vmatpush1.msra.mxu0 0.0
    %509 = vmatprep.subr.mxu0 0.0
    %510 = vmatpush1.msra.mxu0 0.0
    %511 = vmatprep.subr.mxu0 0.0
    %512 = vmatpush1.msra.mxu0 0.0
    %513 = vmatprep.subr.mxu0 0.0
    %514 = vmatpush1.msra.mxu0 0.0
    %515 = vmatprep.subr.mxu0 0.0
    %516 = vmatpush1.msra.mxu0 0.0
    %517 = vmatprep.subr.mxu0 0.0
    %518 = vmatpush1.msra.mxu0 0.0
    %519 = vmatprep.subr.mxu0 0.0
    %520 = vmatpush1.msra.mxu0 0.0
    %521 = vmatprep.subr.mxu0 0.0
    %522 = vmatpush1.msra.mxu0 0.0
    %523 = vmatprep.subr.mxu0 0.0
    %524 = vmatpush1.msra.mxu0 0.0
    %525 = vmatprep.subr.mxu0 0.0
    %526 = vmatpush1.msra.mxu0 0.0
    %527 = vmatprep.subr.mxu0 0.0
    %528 = vmatpush1.msra.mxu0 0.0
    %529 = vmatprep.subr.mxu0 0.0
    %530 = vmatpush1.msra.mxu0 0.0
    %531 = vmatprep.subr.mxu0 0.0
    %532 = vmatpush1.msra.mxu0 0.0
    %533 = vmatprep.subr.mxu0 0.0
    %534 = vmatpush1.msra.mxu0 0.0
    %535 = vmatprep.subr.mxu0 0.0
    %536 = vmatpush1.msra.mxu0 0.0
    %537 = vmatprep.subr.mxu0 0.0
    %538 = vmatpush1.msra.mxu0 0.0
    %539 = vmatprep.subr.mxu0 0.0
    %540 = vmatpush1.msra.mxu0 0.0
    %541 = vmatprep.mubr.f32.mxu0 0.0
    %542 = vmatmul.mubr.f32.gmra.mrb[0].mxu0 %v472
    %v543 = vpop.f32.mrb[0].mxu0
    %v544 = vadd.f32 %v463, %v543
    %v545 = vpop.f32.mrb[0].mxu0
    %546 = vmatprep.mubr.f32.mxu0 0.0
    %547 = vmatmul.mubr.f32.gmra.mrb[0].mxu0 %v475
    %v548 = vpop.f32.mrb[0].mxu0
    %v549 = vadd.f32 %v468, %v548
    %v550 = vpop.f32.mrb[0].mxu0
    %551 = vdwg.mxu0
    %v552 = vld [vmem:[#allocation3 + $0x2] sm:$0xff]
    %v553 = vld [vmem:[#allocation3 + $0x12] sm:$0xff]
    %s554 = scalar_lea.vmem %s3, 160
    %v555 = vld [vmem:[%s554] sm:$0xff]
    %v556 = vld [vmem:[%s554 + $0x8] sm:$0xff]
    %v557 = vld [vmem:[%s554 + $0x10] sm:$0xff]
    %v558 = vld [vmem:[%s554 + $0x18] sm:$0xff]
    %v559 = vld [vmem:[%s554 + $0x20] sm:$0xff]
    %v560 = vld [vmem:[%s554 + $0x28] sm:$0xff]
    %v561 = vld [vmem:[%s554 + $0x30] sm:$0xff]
    %v562 = vld [vmem:[%s554 + $0x38] sm:$0xff]
    %v563 = vld [vmem:[%s554 + $0x40] sm:$0xff]
    %v564 = vld [vmem:[%s554 + $0x48] sm:$0xff]
    %v566 = vsel %vm389, %v552, 0
    %v569 = vsel %vm389, %v553, 0
    %571 = vmatprep.subr.mxu0 0.0
    %572 = vmatpush1.msra.mxu0 %v555
    %573 = vmatprep.subr.mxu0 0.0
    %574 = vmatpush1.msra.mxu0 %v556
    %575 = vmatprep.subr.mxu0 0.0
    %576 = vmatpush1.msra.mxu0 %v557
    %577 = vmatprep.subr.mxu0 0.0
    %578 = vmatpush1.msra.mxu0 %v558
    %579 = vmatprep.subr.mxu0 0.0
    %580 = vmatpush1.msra.mxu0 %v559
    %581 = vmatprep.subr.mxu0 0.0
    %582 = vmatpush1.msra.mxu0 %v560
    %583 = vmatprep.subr.mxu0 0.0
    %584 = vmatpush1.msra.mxu0 %v561
    %585 = vmatprep.subr.mxu0 0.0
    %586 = vmatpush1.msra.mxu0 %v562
    %587 = vmatprep.subr.mxu0 0.0
    %588 = vmatpush1.msra.mxu0 %v563
    %589 = vmatprep.subr.mxu0 0.0
    %590 = vmatpush1.msra.mxu0 %v564
    %591 = vmatprep.subr.mxu0 0.0
    %592 = vmatpush1.msra.mxu0 0.0
    %593 = vmatprep.subr.mxu0 0.0
    %594 = vmatpush1.msra.mxu0 0.0
    %595 = vmatprep.subr.mxu0 0.0
    %596 = vmatpush1.msra.mxu0 0.0
    %597 = vmatprep.subr.mxu0 0.0
    %598 = vmatpush1.msra.mxu0 0.0
    %599 = vmatprep.subr.mxu0 0.0
    %600 = vmatpush1.msra.mxu0 0.0
    %601 = vmatprep.subr.mxu0 0.0
    %602 = vmatpush1.msra.mxu0 0.0
    %603 = vmatprep.subr.mxu0 0.0
    %604 = vmatpush1.msra.mxu0 0.0
    %605 = vmatprep.subr.mxu0 0.0
    %606 = vmatpush1.msra.mxu0 0.0
    %607 = vmatprep.subr.mxu0 0.0
    %608 = vmatpush1.msra.mxu0 0.0
    %609 = vmatprep.subr.mxu0 0.0
    %610 = vmatpush1.msra.mxu0 0.0
    %611 = vmatprep.subr.mxu0 0.0
    %612 = vmatpush1.msra.mxu0 0.0
    %613 = vmatprep.subr.mxu0 0.0
    %614 = vmatpush1.msra.mxu0 0.0
    %615 = vmatprep.subr.mxu0 0.0
    %616 = vmatpush1.msra.mxu0 0.0
    %617 = vmatprep.subr.mxu0 0.0
    %618 = vmatpush1.msra.mxu0 0.0
    %619 = vmatprep.subr.mxu0 0.0
    %620 = vmatpush1.msra.mxu0 0.0
    %621 = vmatprep.subr.mxu0 0.0
    %622 = vmatpush1.msra.mxu0 0.0
    %623 = vmatprep.subr.mxu0 0.0
    %624 = vmatpush1.msra.mxu0 0.0
    %625 = vmatprep.subr.mxu0 0.0
    %626 = vmatpush1.msra.mxu0 0.0
    %627 = vmatprep.subr.mxu0 0.0
    %628 = vmatpush1.msra.mxu0 0.0
    %629 = vmatprep.subr.mxu0 0.0
    %630 = vmatpush1.msra.mxu0 0.0
    %631 = vmatprep.subr.mxu0 0.0
    %632 = vmatpush1.msra.mxu0 0.0
    %633 = vmatprep.subr.mxu0 0.0
    %634 = vmatpush1.msra.mxu0 0.0
    %635 = vmatprep.mubr.f32.mxu0 0.0
    %636 = vmatmul.mubr.f32.gmra.mrb[0].mxu0 %v566
    %v637 = vpop.f32.mrb[0].mxu0
    %v638 = vadd.f32 0.0, %v637
    %v639 = vpop.f32.mrb[0].mxu0
    %640 = vmatprep.mubr.f32.mxu0 0.0
    %641 = vmatmul.mubr.f32.gmra.mrb[0].mxu0 %v569
    %v642 = vpop.f32.mrb[0].mxu0
    %v643 = vadd.f32 0.0, %v642
    %v644 = vpop.f32.mrb[0].mxu0
    %645 = vdwg.mxu0
    %v646 = vadd.f32 %v544, %v638
    %v647 = vadd.f32 %v549, %v643
    %v648 = vld [vmem:[%s4] sm:$0x1]
    %v650 = vlaneseq
    %v651 = vshrl.u32 %v650, 7
    %v652 = vsub.s32 0, %v651
    %v653 = vrot.slane %v648, %v652
    %v655 = vadd.f32 %v646, %v653
    %v656 = vadd.f32 %v647, %v653
    %vm657 = vcmp.gt.f32.partialorder %v655, 0.0
    %vm658 = vcmp.gt.f32.partialorder %v656, 0.0
    %v659 = vmul.f32 %v655, 1.442695
    %v660 = vpow.pop %v659
    %v661 = vmul.f32 %v656, 1.442695
    %v662 = vpow.pop %v661
    %v663 = vsub.f32 %v660, 1.0
    %v664 = vsub.f32 %v662, 1.0
    %v665 = vsel %vm657, %v655, %v663
    %v666 = vsel %vm658, %v656, %v664
    %vm667 = vcmask 523264
    %668 = vst.msk [vmem:[#allocation4] sm:$0xff] %vm667, %v665
    %669 = vst.msk [vmem:[#allocation4 + $0x8] sm:$0xff] %vm667, %v666
    // Predicated region
    $region26: #{tpu_custom_call.1} parent=1 // pred_check
      _
    $region27: #{tpu_custom_call.1} parent=1 // pred_check_branch
      %671 = sbr.rel (0) target = $region29
    $region28: #{tpu_custom_call.1} parent=1 // pred_region
      %s673 = ssub.s32 256, 256
      %674 = vsyncadd [#allocation5], %s673
      %s675 = sshll.u32 [#allocation4], 4
      %s676 = int_to_ptr.vmem [resolvable:$true] %s675
      %681 = dma.vmem_to_hbm [thread:$0]  %s676, 256, %s5, [#allocation5], 128, 128, 8
    $region29: #{tpu_custom_call.1} parent=1 // pred_fallthru
      _
    // Predicated region
    $region30: #{tpu_custom_call.1} parent=1 // pred_check
      _
    $region31: #{tpu_custom_call.1} parent=1 // pred_check_branch
      %683 = sbr.rel (0) target = $region33
    $region32: #{tpu_custom_call.1} parent=1 // pred_region
      %684 = dma.done [#allocation5], 256
    $region33: #{tpu_custom_call.1} parent=1 // pred_fallthru
      _
    %685 = vsyncpa [#allocation5], 1

</llo_original>
